<compile_context>
chip_gen: v6e
topology: v6e:2x2x1
jax: 0.10.0
libtpu: 0.0.40
codegen_flags: <defaults>
</compile_context>

<pallas_src>
import jax
import jax.numpy as jnp
from jax.experimental import pallas as pl
from jax.experimental.pallas import tpu as pltpu

_MiB = 1024 * 1024


# --------------------------------------------------------------------------- #
# Kernel
# --------------------------------------------------------------------------- #
def _mlp_softmax_kernel(x_ref, w1_ref, b1_ref, w2_ref, b2_ref, o_ref):
    # Cast the f32 input tile to bf16 in-kernel (VPU work hidden under DMA).
    x = x_ref[...].astype(jnp.bfloat16)

    # Linear 1: bf16 operands, f32 accumulation on the MXU; bias + ReLU in f32.
    h = jnp.dot(x, w1_ref[...], preferred_element_type=jnp.float32)
    h = jnp.maximum(h + b1_ref[...], 0.0)          # (tb, hidden) + (1, hidden)

    # Linear 2: activations -> bf16 for the MXU, accumulate f32.
    logits = jnp.dot(h.astype(jnp.bfloat16), w2_ref[...],
                     preferred_element_type=jnp.float32)
    logits = logits + b2_ref[...]                  # (tb, out) + (1, out)

    # Numerically stable softmax over the feature axis (PyTorch dim=1).
    m = jnp.max(logits, axis=-1, keepdims=True)
    e = jnp.exp(logits - m)
    denom = jnp.sum(e, axis=-1, keepdims=True)
    o_ref[...] = (e * pl.reciprocal(denom, approx=False)).astype(o_ref.dtype)


# --------------------------------------------------------------------------- #
# Sizing helpers
# --------------------------------------------------------------------------- #
def _round_up(n, m):
    return ((n + m - 1) // m) * m


def _vmem_capacity_bytes():
    """Per-core VMEM capacity; conservative 64 MiB (v7x) fallback."""
    try:
        return int(pltpu.get_tpu_info().vmem_capacity_bytes)
    except Exception:
        return 64 * _MiB


def _vmem_estimate(tb, in_f, hidden, out_f):
    """Rough VMEM footprint for one grid step (bytes)."""
    bf16, f32 = 2, 4
    x_tile = 2 * tb * in_f * f32                         # double-buffered f32 input tile
    o_tile = 2 * tb * out_f * f32                        # double-buffered f32 output tile
    weights = 2 * ((in_f * hidden + hidden * out_f) * bf16   # double-buffered weights
                   + (hidden + out_f) * f32)                  # + biases
    interm = tb * hidden * f32 + 3 * tb * out_f * f32    # h, logits, e, out temp (f32)
    return x_tile + o_tile + weights + interm


def _choose_batch_tile(B, in_f, hidden, out_f, budget):
    """Largest multiple-of-8 batch tile that fits the VMEM budget.

    For B >= 16 the tile is chosen so the grid has >= 2 steps, letting the
    "parallel" batch axis shard across both TensorCores on v7x (no effect on
    single-TC v5e/v6e).
    """
    if B < 16:
        return B                       # block == full dim satisfies the (8,128) rule
    tb = min(_round_up(pl.cdiv(B, 2), 8), 2048)
    while tb > 8 and _vmem_estimate(tb, in_f, hidden, out_f) > budget:
        tb -= 8
    return tb


# --------------------------------------------------------------------------- #
# Wrapper
# --------------------------------------------------------------------------- #
def prepare_params(w1, b1, w2, b2):
    """One-time parameter prep (amortized across forward calls).

    w1: (in_features, hidden), w2: (hidden, out_features) -- transposed vs.
    torch nn.Linear. Weights -> bf16 (MXU operands); biases -> f32 row vectors.
    """
    return (jnp.asarray(w1, jnp.bfloat16),
            jnp.asarray(b1, jnp.float32).reshape(1, -1),
            jnp.asarray(w2, jnp.bfloat16),
            jnp.asarray(b2, jnp.float32).reshape(1, -1))


def model_simple_forward(x, w1b, b1r, w2b, b2r, *, tb=None):
    """softmax(relu(x @ w1 + b1) @ w2 + b2, axis=1). Params from prepare_params."""
    B, in_f = x.shape
    hidden = w1b.shape[1]
    out_f = w2b.shape[1]
    out_dtype = x.dtype

    capacity = _vmem_capacity_bytes()
    budget = capacity - 8 * _MiB                 # generation-aware VMEM budget

    if tb is None:
        tb = _choose_batch_tile(B, in_f, hidden, out_f, budget)

    # TODO(synk): if the resident bf16 weights themselves ever exceed the VMEM
    # budget (e.g. very large hidden on v7x's 64 MiB), add a reduction-axis grid
    # dim with an f32 accumulator scratch (P3) instead of keeping them resident.

    est = _vmem_estimate(tb, in_f, hidden, out_f)
    vmem_limit = None
    if est > 24 * _MiB:
        vmem_limit = min(int(est * 1.25) + 8 * _MiB, capacity - 8 * _MiB)

    grid = (pl.cdiv(B, tb),)

    flops = 2 * B * (in_f * hidden + hidden * out_f)
    bytes_accessed = (B * in_f * 4
                      + (in_f * hidden + hidden * out_f) * 2
                      + (hidden + out_f) * 4
                      + B * out_f * 4)
    cost = pl.CostEstimate(flops=flops,
                           transcendentals=B * (out_f + 1),
                           bytes_accessed=bytes_accessed)

    call = pl.pallas_call(
        _mlp_softmax_kernel,
        out_shape=jax.ShapeDtypeStruct((B, out_f), out_dtype),
        grid_spec=pltpu.PrefetchScalarGridSpec(
            num_scalar_prefetch=0,
            grid=grid,
            in_specs=[
                pl.BlockSpec((tb, in_f), lambda i: (i, 0)),       # x tile (f32)
                pl.BlockSpec((in_f, hidden), lambda i: (0, 0)),   # w1 (resident)
                pl.BlockSpec((1, hidden), lambda i: (0, 0)),      # b1
                pl.BlockSpec((hidden, out_f), lambda i: (0, 0)),  # w2 (resident)
                pl.BlockSpec((1, out_f), lambda i: (0, 0)),       # b2
            ],
            out_specs=pl.BlockSpec((tb, out_f), lambda i: (i, 0)),
        ),
        compiler_params=pltpu.CompilerParams(
            dimension_semantics=("parallel",),
            vmem_limit_bytes=vmem_limit,
        ),
        cost_estimate=cost,
    )
    return call(x, w1b, b1r, w2b, b2r)


# --------------------------------------------------------------------------- #
# Self-test
# --------------------------------------------------------------------------- #
if __name__ == "__main__":
    # Small shapes consistent with the module's forward: x is (batch, in_features).
    batch, in_features, hidden, out_features = 8, 32, 64, 16

    key = jax.random.PRNGKey(0)
    kx, kw1, kb1, kw2, kb2 = jax.random.split(key, 5)

    x = jax.random.normal(kx, (batch, in_features), dtype=jnp.float32)
    # "nn.Linear"-style params, stored transposed vs. PyTorch.
    w1 = jax.random.normal(kw1, (in_features, hidden), dtype=jnp.float32) * 0.1
    b1 = jax.random.normal(kb1, (hidden,), dtype=jnp.float32) * 0.1
    w2 = jax.random.normal(kw2, (hidden, out_features), dtype=jnp.float32) * 0.1
    b2 = jax.random.normal(kb2, (out_features,), dtype=jnp.float32) * 0.1

    params = prepare_params(w1, b1, w2, b2)       # one-time prep, reused per call
    out = model_simple_forward(x, *params)
    out = jax.block_until_ready(out)
    assert out.shape == (batch, out_features)
    assert bool(jnp.all(jnp.isfinite(out)))

    # Reference mirroring the kernel's bf16-operand / f32-accumulate matmuls.
    h_ref = jnp.maximum(
        jnp.dot(x.astype(jnp.bfloat16), w1.astype(jnp.bfloat16),
                preferred_element_type=jnp.float32) + b1, 0.0)
    logits_ref = jnp.dot(h_ref.astype(jnp.bfloat16), w2.astype(jnp.bfloat16),
                         preferred_element_type=jnp.float32) + b2
    ref = jax.nn.softmax(logits_ref, axis=1)
    assert jnp.allclose(out, ref, atol=2e-3, rtol=2e-3), \
        float(jnp.max(jnp.abs(out - ref)))

    # Coarse parity with the full-precision PyTorch-equivalent forward.
    ref_f32 = jax.nn.softmax(jnp.maximum(x @ w1 + b1, 0.0) @ w2 + b2, axis=1)
    assert jnp.allclose(out, ref_f32, atol=5e-2, rtol=5e-2)

    print("KERNEL_OK")
</pallas_src>

<mosaic_0001>
module attributes {stable_mosaic.version = 11 : i64} {
  func.func @_mlp_softmax_kernel(%arg0: i32, %arg1: memref<8x32xf32, #tpu.memory_space<vmem>>, %arg2: memref<32x64xbf16, #tpu.memory_space<vmem>>, %arg3: memref<1x64xf32, #tpu.memory_space<vmem>>, %arg4: memref<64x16xbf16, #tpu.memory_space<vmem>>, %arg5: memref<1x16xf32, #tpu.memory_space<vmem>>, %arg6: memref<8x16xf32, #tpu.memory_space<vmem>>) attributes {dimension_semantics = [#tpu.dimension_semantics<parallel>], iteration_bounds = array<i64: 1>, scalar_prefetch = 0 : i64, scratch_operands = 0 : i64, tpu.core_type = #tpu.core_type<tc>, window_params = [{transform_indices = @transform_0, window_bounds = array<i64: 8, 32>}, {pipeline_mode = #tpu.pipeline_mode<synchronous>, transform_indices = @transform_1, window_bounds = array<i64: 32, 64>}, {pipeline_mode = #tpu.pipeline_mode<synchronous>, transform_indices = @transform_2, window_bounds = array<i64: 1, 64>}, {pipeline_mode = #tpu.pipeline_mode<synchronous>, transform_indices = @transform_3, window_bounds = array<i64: 64, 16>}, {pipeline_mode = #tpu.pipeline_mode<synchronous>, transform_indices = @transform_4, window_bounds = array<i64: 1, 16>}, {transform_indices = @transform_5, window_bounds = array<i64: 8, 16>}]} {
    %c0 = arith.constant 0 : index
    %c0_0 = arith.constant 0 : index
    %0 = vector.load %arg1[%c0, %c0_0] : memref<8x32xf32, #tpu.memory_space<vmem>>, vector<8x32xf32>
    %1 = arith.truncf %0 : vector<8x32xf32> to vector<8x32xbf16>
    %c0_1 = arith.constant 0 : index
    %c0_2 = arith.constant 0 : index
    %2 = vector.load %arg2[%c0_1, %c0_2] : memref<32x64xbf16, #tpu.memory_space<vmem>>, vector<32x64xbf16>
    %cst = arith.constant dense<0.000000e+00> : vector<8x64xf32>
    %3 = tpu.matmul %1, %2, %cst {dimension_numbers = #tpu.dot_dimension_numbers<[1], [0], [0], [1], [0, 0, 1, 1], [], []>} : vector<8x32xbf16>, vector<32x64xbf16>, vector<8x64xf32> -> vector<8x64xf32>
    %c0_3 = arith.constant 0 : index
    %c0_4 = arith.constant 0 : index
    %4 = vector.load %arg3[%c0_3, %c0_4] : memref<1x64xf32, #tpu.memory_space<vmem>>, vector<1x64xf32>
    %5 = vector.broadcast %4 : vector<1x64xf32> to vector<8x64xf32>
    %6 = arith.addf %3, %5 : vector<8x64xf32>
    %cst_5 = arith.constant 0.000000e+00 : f32
    %7 = vector.broadcast %cst_5 : f32 to vector<8x64xf32>
    %8 = arith.maximumf %6, %7 : vector<8x64xf32>
    %9 = arith.truncf %8 : vector<8x64xf32> to vector<8x64xbf16>
    %c0_6 = arith.constant 0 : index
    %c0_7 = arith.constant 0 : index
    %10 = vector.load %arg4[%c0_6, %c0_7] : memref<64x16xbf16, #tpu.memory_space<vmem>>, vector<64x16xbf16>
    %cst_8 = arith.constant dense<0.000000e+00> : vector<8x16xf32>
    %11 = tpu.matmul %9, %10, %cst_8 {dimension_numbers = #tpu.dot_dimension_numbers<[1], [0], [0], [1], [0, 0, 1, 1], [], []>} : vector<8x64xbf16>, vector<64x16xbf16>, vector<8x16xf32> -> vector<8x16xf32>
    %c0_9 = arith.constant 0 : index
    %c0_10 = arith.constant 0 : index
    %12 = vector.load %arg5[%c0_9, %c0_10] : memref<1x16xf32, #tpu.memory_space<vmem>>, vector<1x16xf32>
    %13 = vector.broadcast %12 : vector<1x16xf32> to vector<8x16xf32>
    %14 = arith.addf %11, %13 : vector<8x16xf32>
    %cst_11 = arith.constant dense<0xFF800000> : vector<8xf32>
    %15 = vector.multi_reduction <maximumf>, %14, %cst_11 [1] : vector<8x16xf32> to vector<8xf32>
    %16 = vector.shape_cast %15 : vector<8xf32> to vector<8x1xf32>
    %17 = vector.broadcast %16 : vector<8x1xf32> to vector<8x16xf32>
    %18 = arith.subf %14, %17 : vector<8x16xf32>
    %19 = math.exp %18 : vector<8x16xf32>
    %cst_12 = arith.constant dense<0.000000e+00> : vector<8xf32>
    %20 = vector.multi_reduction <add>, %19, %cst_12 [1] : vector<8x16xf32> to vector<8xf32>
    %21 = vector.shape_cast %20 : vector<8xf32> to vector<8x1xf32>
    %22 = tpu.reciprocal %21 : vector<8x1xf32> -> vector<8x1xf32>
    %23 = vector.broadcast %22 : vector<8x1xf32> to vector<8x16xf32>
    %24 = arith.mulf %19, %23 : vector<8x16xf32>
    %c0_13 = arith.constant 0 : index
    %c0_14 = arith.constant 0 : index
    %25 = vector.load %arg6[%c0_13, %c0_14] : memref<8x16xf32, #tpu.memory_space<vmem>>, vector<8x16xf32>
    tpu.vector_store %arg6[%c0_13, %c0_14], %24 {strides = array<i32>} : memref<8x16xf32, #tpu.memory_space<vmem>>, vector<8x16xf32>,
    return
  }
  func.func @transform_0(%arg0: i32) -> (i32, i32) {
    %c0_i32 = arith.constant 0 : i32
    %c0_i32_0 = arith.constant 0 : i32
    return %arg0, %c0_i32 : i32, i32
  }
  func.func @transform_1(%arg0: i32) -> (i32, i32) {
    %c0_i32 = arith.constant 0 : i32
    %c0_i32_0 = arith.constant 0 : i32
    %c0_i32_1 = arith.constant 0 : i32
    return %c0_i32, %c0_i32_0 : i32, i32
  }
  func.func @transform_2(%arg0: i32) -> (i32, i32) {
    %c0_i32 = arith.constant 0 : i32
    %c0_i32_0 = arith.constant 0 : i32
    %c0_i32_1 = arith.constant 0 : i32
    return %c0_i32, %c0_i32_0 : i32, i32
  }
  func.func @transform_3(%arg0: i32) -> (i32, i32) {
    %c0_i32 = arith.constant 0 : i32
    %c0_i32_0 = arith.constant 0 : i32
    %c0_i32_1 = arith.constant 0 : i32
    return %c0_i32, %c0_i32_0 : i32, i32
  }
  func.func @transform_4(%arg0: i32) -> (i32, i32) {
    %c0_i32 = arith.constant 0 : i32
    %c0_i32_0 = arith.constant 0 : i32
    %c0_i32_1 = arith.constant 0 : i32
    return %c0_i32, %c0_i32_0 : i32, i32
  }
  func.func @transform_5(%arg0: i32) -> (i32, i32) {
    %c0_i32 = arith.constant 0 : i32
    %c0_i32_0 = arith.constant 0 : i32
    return %arg0, %c0_i32 : i32, i32
  }
}

</mosaic_0001>

<llo_original>
// kernel: tpu_custom_call.1
$region0: #{tpu_custom_call.1}
  #allocation0 [shape = 'u32[]', space=smem, size = 0x4, offset = 0x4, fixed_abs, tag = 'smem constant byte address 0x4 - core index']
  #allocation1 [shape = 'u32[144,128]{1,0:T(1,128)}', space=vmem, size = 0x12000, scoped, tag = 'internal scratch']
  %s0 = inlined_call_operand.vmem [shape: f32[8,32], index: 0, kind: input, shape index: {}]
  %s1 = inlined_call_operand.vmem [shape: bf16[32,64], index: 1, kind: input, shape index: {}]
  %s2 = inlined_call_operand.vmem [shape: f32[1,64], index: 2, kind: input, shape index: {}]
  %s3 = inlined_call_operand.vmem [shape: bf16[64,16], index: 3, kind: input, shape index: {}]
  %s4 = inlined_call_operand.vmem [shape: f32[1,16], index: 4, kind: input, shape index: {}]
  %s5 = inlined_call_operand.hbm [shape: f32[8,16], index: 5, kind: output, shape index: {}]
  %s6 = sld [smem:[#allocation0]]
  $region30: #{tpu_custom_call.1} parent=0
    _
  %s8 = ssub.s32 1, %s6
  %s9 = scalar_select 0, %s8, %s6
  $region1: #{tpu_custom_call.1} parent=0
    #allocation2 [shape = 'u8[4096]{0}', space=vmem, size = 0x1000, scoped, tag = 'output window, operand 0, single buffered']
    #allocation3 [shape = 's32[1]{0}', space=sflag, size = 0x4, scoped, tag = 'scoped memory for tpu_custom_call.1']
    %10 = vsyncpa [#allocation3], 0
    // Predicated region
    $region2: #{tpu_custom_call.1} parent=1 // pred_check
      _
    $region3: #{tpu_custom_call.1} parent=1 // pred_check_branch
      %12 = sbr.rel (0) target = $region5
    $region4: #{tpu_custom_call.1} parent=1 // pred_region
      _
    $region5: #{tpu_custom_call.1} parent=1 // pred_fallthru
      _
    // Predicated region
    $region6: #{tpu_custom_call.1} parent=1 // pred_check
      _
    $region7: #{tpu_custom_call.1} parent=1 // pred_check_branch
      %14 = sbr.rel (0) target = $region9
    $region8: #{tpu_custom_call.1} parent=1 // pred_region
      _
    $region9: #{tpu_custom_call.1} parent=1 // pred_fallthru
      _
    // Predicated region
    $region10: #{tpu_custom_call.1} parent=1 // pred_check
      _
    $region11: #{tpu_custom_call.1} parent=1 // pred_check_branch
      %16 = sbr.rel (0) target = $region13
    $region12: #{tpu_custom_call.1} parent=1 // pred_region
      _
    $region13: #{tpu_custom_call.1} parent=1 // pred_fallthru
      _
    // Predicated region
    $region14: #{tpu_custom_call.1} parent=1 // pred_check
      _
    $region15: #{tpu_custom_call.1} parent=1 // pred_check_branch
      %18 = sbr.rel (0) target = $region17
    $region16: #{tpu_custom_call.1} parent=1 // pred_region
      _
    $region17: #{tpu_custom_call.1} parent=1 // pred_fallthru
      _
    // Predicated region
    $region18: #{tpu_custom_call.1} parent=1 // pred_check
      _
    $region19: #{tpu_custom_call.1} parent=1 // pred_check_branch
      %20 = sbr.rel (0) target = $region21
    $region20: #{tpu_custom_call.1} parent=1 // pred_region
      _
    $region21: #{tpu_custom_call.1} parent=1 // pred_fallthru
      _
    %v22 = vld [vmem:[%s0] sm:$0xff]
    %v23 = vpack.c.bf16 %v22, %v22
    %v24 = vld [vmem:[%s1] sm:$0xf]
    %v25 = vld [vmem:[%s1 + $0x4] sm:$0xf]
    %v26 = vld [vmem:[%s1 + $0x8] sm:$0xf]
    %v27 = vld [vmem:[%s1 + $0xc] sm:$0xf]
    %v28 = vld [vmem:[%s2] sm:$0x1]
    %v30 = vlaneseq
    %v31 = vshrl.u32 %v30, 7
    %v32 = vsub.s32 0, %v31
    %v33 = vrot.slane %v28, %v32
    %v39 = vunpack.c.l.b16 %v24
    %v40 = vunpack.c.l.b16 %v25
    %v41 = vunpack.c.l.b16 %v26
    %v42 = vunpack.c.l.b16 %v27
    %v43 = vpack.c.b16 %v40, %v39
    %v44 = vpack.c.b16 %v42, %v41
    %vm47 = vcmask 261120
    %v49 = vsel %vm47, %v23, 0
    %51 = vmatprep.subr.bf16.mxu0 0
    %52 = vmatpush1.bf16.msra.mxu0 0
    %53 = vmatprep.subr.bf16.mxu0 0
    %54 = vmatpush1.bf16.msra.mxu0 0
    %55 = vmatprep.subr.bf16.mxu0 0
    %56 = vmatpush1.bf16.msra.mxu0 0
    %57 = vmatprep.subr.bf16.mxu0 0
    %58 = vmatpush1.bf16.msra.mxu0 0
    %59 = vmatprep.subr.bf16.mxu0 0
    %60 = vmatpush1.bf16.msra.mxu0 0
    %61 = vmatprep.subr.bf16.mxu0 0
    %62 = vmatpush1.bf16.msra.mxu0 0
    %63 = vmatprep.subr.bf16.mxu0 0
    %64 = vmatpush1.bf16.msra.mxu0 %v44
    %65 = vmatprep.subr.bf16.mxu0 0
    %66 = vmatpush1.bf16.msra.mxu0 %v43
    %67 = vmatprep.subr.bf16.mxu0 0
    %68 = vmatpush2.bf16.msra.mxu0 0
    %69 = vmatprep.subr.bf16.mxu0 0
    %70 = vmatpush2.bf16.msra.mxu0 0
    %71 = vmatprep.subr.bf16.mxu0 0
    %72 = vmatpush2.bf16.msra.mxu0 0
    %73 = vmatprep.subr.bf16.mxu0 0
    %74 = vmatpush2.bf16.msra.mxu0 0
    %75 = vmatprep.subr.bf16.mxu0 0
    %76 = vmatpush2.bf16.msra.mxu0 0
    %77 = vmatprep.subr.bf16.mxu0 0
    %78 = vmatpush2.bf16.msra.mxu0 0
    %79 = vmatprep.subr.bf16.mxu0 0
    %80 = vmatpush2.bf16.msra.mxu0 0
    %81 = vmatprep.subr.bf16.mxu0 0
    %82 = vmatpush2.bf16.msra.mxu0 0
    %83 = vmatprep.mubr.bf16.mxu0 0
    %84 = vmatmul.mubr.bf16.gmra.mxu0 %v49
    %v85 = vpop.f32.mrf.mxu0
    %v86 = vadd.f32 %v33, %v85
    %v87 = vpop.f32.mrf.mxu0
    %v88 = vpop.f32.mrf.mxu0
    %v89 = vpop.f32.mrf.mxu0
    %90 = vdwg.mxu0
    %v91 = vmax.f32 %v86, 0.0
    %v92 = vpack.c.bf16 %v91, %v91
    %v93 = vld [vmem:[%s3] sm:$0xf]
    %v94 = vld [vmem:[%s3 + $0x4] sm:$0xf]
    %v95 = vld [vmem:[%s3 + $0x8] sm:$0xf]
    %v96 = vld [vmem:[%s3 + $0xc] sm:$0xf]
    %v97 = vld [vmem:[%s3 + $0x10] sm:$0xf]
    %v98 = vld [vmem:[%s3 + $0x14] sm:$0xf]
    %v99 = vld [vmem:[%s3 + $0x18] sm:$0xf]
    %v100 = vld [vmem:[%s3 + $0x1c] sm:$0xf]
    %v101 = vld [vmem:[%s4] sm:$0x1]
    %v103 = vlaneseq
    %v104 = vshrl.u32 %v103, 7
    %v105 = vsub.s32 0, %v104
    %v106 = vrot.slane %v101, %v105
    %v116 = vunpack.c.l.b16 %v93
    %v117 = vunpack.c.l.b16 %v94
    %v118 = vunpack.c.l.b16 %v95
    %v119 = vunpack.c.l.b16 %v96
    %v120 = vunpack.c.l.b16 %v97
    %v121 = vunpack.c.l.b16 %v98
    %v122 = vunpack.c.l.b16 %v99
    %v123 = vunpack.c.l.b16 %v100
    %v124 = vpack.c.b16 %v117, %v116
    %v125 = vpack.c.b16 %v119, %v118
    %v126 = vpack.c.b16 %v121, %v120
    %v127 = vpack.c.b16 %v123, %v122
    %vm132 = vcmask 523264
    %v134 = vsel %vm132, %v92, 0
    %136 = vmatprep.subr.bf16.mxu0 0
    %137 = vmatpush1.bf16.msra.mxu0 0
    %138 = vmatprep.subr.bf16.mxu0 0
    %139 = vmatpush1.bf16.msra.mxu0 0
    %140 = vmatprep.subr.bf16.mxu0 0
    %141 = vmatpush1.bf16.msra.mxu0 0
    %142 = vmatprep.subr.bf16.mxu0 0
    %143 = vmatpush1.bf16.msra.mxu0 0
    %144 = vmatprep.subr.bf16.mxu0 0
    %145 = vmatpush1.bf16.msra.mxu0 %v127
    %146 = vmatprep.subr.bf16.mxu0 0
    %147 = vmatpush1.bf16.msra.mxu0 %v126
    %148 = vmatprep.subr.bf16.mxu0 0
    %149 = vmatpush1.bf16.msra.mxu0 %v125
    %150 = vmatprep.subr.bf16.mxu0 0
    %151 = vmatpush1.bf16.msra.mxu0 %v124
    %152 = vmatprep.subr.bf16.mxu0 0
    %153 = vmatpush2.bf16.msra.mxu0 0
    %154 = vmatprep.subr.bf16.mxu0 0
    %155 = vmatpush2.bf16.msra.mxu0 0
    %156 = vmatprep.subr.bf16.mxu0 0
    %157 = vmatpush2.bf16.msra.mxu0 0
    %158 = vmatprep.subr.bf16.mxu0 0
    %159 = vmatpush2.bf16.msra.mxu0 0
    %160 = vmatprep.subr.bf16.mxu0 0
    %161 = vmatpush2.bf16.msra.mxu0 0
    %162 = vmatprep.subr.bf16.mxu0 0
    %163 = vmatpush2.bf16.msra.mxu0 0
    %164 = vmatprep.subr.bf16.mxu0 0
    %165 = vmatpush2.bf16.msra.mxu0 0
    %166 = vmatprep.subr.bf16.mxu0 0
    %167 = vmatpush2.bf16.msra.mxu0 0
    %168 = vmatprep.mubr.bf16.mxu0 0
    %169 = vmatmul.mubr.bf16.gmra.mxu0 %v134
    %v170 = vpop.f32.mrf.mxu0
    %v171 = vadd.f32 %v106, %v170
    %v172 = vpop.f32.mrf.mxu0
    %v173 = vpop.f32.mrf.mxu0
    %v174 = vpop.f32.mrf.mxu0
    %175 = vdwg.mxu0
    %vm176 = vcmask 130048
    %v177 = vsel %vm176, %v171, -inf
    %178 = vmax.xlane.f32.xlu0 %v177
    %v179 = vpop.xlane.xlu0 %178
    %v180 = vsub.f32 %v171, %v179
    %v181 = vmul.f32 %v180, 1.442695
    %v182 = vpow.pop %v181
    %v183 = vsel %vm176, %v182, 0.0
    %184 = vadd.xlane.f32.xlu0 %v183
    %v185 = vpop.xlane.xlu0 %184
    %v186 = vrcp.pop %v185
    %v187 = vmul.f32 %v182, %v186
    %188 = vst.msk [vmem:[#allocation2] sm:$0xff] %vm176, %v187
    // Predicated region
    $region22: #{tpu_custom_call.1} parent=1 // pred_check
      _
    $region23: #{tpu_custom_call.1} parent=1 // pred_check_branch
      %190 = sbr.rel (0) target = $region25
    $region24: #{tpu_custom_call.1} parent=1 // pred_region
      %s192 = ssub.s32 128, 128
      %193 = vsyncadd [#allocation3], %s192
      %s195 = sshll.u32 [#allocation2], 4
      %s196 = int_to_ptr.vmem [resolvable:$true] %s195
      %198 = dma.vmem_to_hbm [thread:$0]  %s196, 128, %s5, [#allocation3]
    $region25: #{tpu_custom_call.1} parent=1 // pred_fallthru
      _
    // Predicated region
    $region26: #{tpu_custom_call.1} parent=1 // pred_check
      _
    $region27: #{tpu_custom_call.1} parent=1 // pred_check_branch
      %200 = sbr.rel (0) target = $region29
    $region28: #{tpu_custom_call.1} parent=1 // pred_region
      %201 = dma.done [#allocation3], 128
    $region29: #{tpu_custom_call.1} parent=1 // pred_fallthru
      _
    %202 = vsyncpa [#allocation3], 1

</llo_original>
